<compile_context>
chip_gen: v7x
topology: tpu7x:2x2x1
jax: 0.10.0
libtpu: 0.0.40
codegen_flags: <defaults>
</compile_context>

<pallas_src>
import jax
import jax.numpy as jnp
from jax import lax
from jax.experimental import pallas as pl
from jax.experimental.pallas import tpu as pltpu


_SQRT_HALF = 0.7071067811865476


def _erf_poly(x):
    # Abramowitz & Stegun 7.1.26 rational approximation of erf, |error| < 1.5e-7.
    a1, a2, a3, a4, a5 = (0.254829592, -0.284496736, 1.421413741,
                          -1.453152027, 1.061405429)
    p = 0.3275911
    ax = jnp.abs(x)
    t = 1.0 / (1.0 + p * ax)
    poly = ((((a5 * t + a4) * t + a3) * t + a2) * t + a1) * t
    y = 1.0 - poly * jnp.exp(-ax * ax)
    return jnp.where(x >= 0, y, -y)


def _gelu_exact(x):
    # Matches torch.nn.GELU() (exact / erf form) to ~1e-7.
    return 0.5 * x * (1.0 + _erf_poly(x * _SQRT_HALF))


def _mlp_kernel(x_ref, w1_ref, b1_ref, w2_ref, b2_ref, o_ref):
    # x_ref:  (tile_m, H)        activations row tile
    # w1_ref: (H, F), b1_ref: (1, F)   first Linear (weights resident in VMEM)
    # w2_ref: (F, H), b2_ref: (1, H)   second Linear
    # o_ref:  (tile_m, H)
    h = jnp.dot(x_ref[...], w1_ref[...], preferred_element_type=jnp.float32)
    h = h + b1_ref[...]
    h = _gelu_exact(h)                              # f32 activation math
    h = h.astype(w2_ref.dtype)                      # bf16 only if compute_dtype=bf16
    o = jnp.dot(h, w2_ref[...], preferred_element_type=jnp.float32)
    o = o + b2_ref[...]
    o_ref[...] = o.astype(o_ref.dtype)


def _round_up(a, b):
    return ((a + b - 1) // b) * b


def mlp_block(x, w1, b1, w2, b2, *, tile_m=512, compute_dtype=jnp.float32):
    """Forward of MLP_block.

    x:  (..., hidden)                    activations (any number of leading dims)
    w1: (mlp_dim, hidden), b1: (mlp_dim,)   torch nn.Linear(hidden, mlp_dim) params
    w2: (hidden, mlp_dim), b2: (hidden,)    torch nn.Linear(mlp_dim, hidden) params
    returns (..., hidden), same dtype as x.
    """
    orig_shape = x.shape
    H = orig_shape[-1]
    F = w1.shape[0]
    assert w1.shape == (F, H) and w2.shape == (H, F)
    assert b1.shape == (F,) and b2.shape == (H,)

    # Flatten leading dims (free, contiguous reshape — no HBM relayout).
    x2 = x.reshape(-1, H)
    M = x2.shape[0]
    out_dtype = x.dtype

    # MXU-path dtype (keep biases / accumulation / GELU in f32 regardless).
    x2 = x2.astype(compute_dtype)
    w1_t = jnp.asarray(w1.T, dtype=compute_dtype)          # (H, F)
    w2_t = jnp.asarray(w2.T, dtype=compute_dtype)          # (F, H)
    b1_r = b1.reshape(1, F).astype(jnp.float32)
    b2_r = b2.reshape(1, H).astype(jnp.float32)

    # Row tile: big (amortize per-step overhead) but keep >= 2 grid steps so the
    # "parallel" axis can shard across the 2 TensorCores of a v7x chip.
    if M > 8:
        tm = max(8, min(tile_m, _round_up(pl.cdiv(M, 2), 8)))
    else:
        tm = M
    grid = (pl.cdiv(M, tm),)

    # VMEM budget: double-buffered x/out tiles, resident weights, intermediate h.
    in_bytes = jnp.dtype(compute_dtype).itemsize
    vmem_est = (2 * tm * H * in_bytes            # x tiles (double-buffered)
                + 2 * tm * H * 4                 # out tiles
                + tm * F * 4                     # intermediate activations
                + H * F * in_bytes + F * H * in_bytes
                + (F + H) * 4)
    vmem_limit = min(int(vmem_est * 2) + (8 << 20), 100 * 1024 * 1024)

    out = pl.pallas_call(
        _mlp_kernel,
        out_shape=jax.ShapeDtypeStruct((M, H), out_dtype),
        grid_spec=pltpu.PrefetchScalarGridSpec(
            num_scalar_prefetch=0,
            grid=grid,
            in_specs=[
                pl.BlockSpec((tm, H), lambda i: (i, 0)),    # x row tile
                pl.BlockSpec((H, F), lambda i: (0, 0)),     # W1 (resident)
                pl.BlockSpec((1, F), lambda i: (0, 0)),     # b1
                pl.BlockSpec((F, H), lambda i: (0, 0)),     # W2 (resident)
                pl.BlockSpec((1, H), lambda i: (0, 0)),     # b2
            ],
            out_specs=pl.BlockSpec((tm, H), lambda i: (i, 0)),
        ),
        compiler_params=pltpu.CompilerParams(
            dimension_semantics=("parallel",),
            vmem_limit_bytes=vmem_limit,
        ),
    )(x2, w1_t, b1_r, w2_t, b2_r)

    return out.reshape(orig_shape)


def _reference(x, w1, b1, w2, b2):
    """Pure-JAX reference: Linear -> exact GELU -> Linear (dropout p=0 is identity)."""
    h = x @ w1.T + b1
    h = jax.nn.gelu(h, approximate=False)
    return h @ w2.T + b2


if __name__ == "__main__":
    key = jax.random.PRNGKey(0)
    B, S, hidden, mlp_dim = 2, 64, 32, 128

    k0, k1, k2, k3, k4 = jax.random.split(key, 5)
    x = jax.random.normal(k0, (B, S, hidden), dtype=jnp.float32)
    w1 = jax.random.normal(k1, (mlp_dim, hidden), dtype=jnp.float32) * (hidden ** -0.5)
    b1 = 0.1 * jax.random.normal(k2, (mlp_dim,), dtype=jnp.float32)
    w2 = jax.random.normal(k3, (hidden, mlp_dim), dtype=jnp.float32) * (mlp_dim ** -0.5)
    b2 = 0.1 * jax.random.normal(k4, (hidden,), dtype=jnp.float32)

    out = mlp_block(x, w1, b1, w2, b2)
    out = jax.block_until_ready(out)

    ref = _reference(x, w1, b1, w2, b2)
    assert out.shape == x.shape, out.shape
    assert jnp.allclose(out, ref, atol=1e-4, rtol=1e-4), float(jnp.max(jnp.abs(out - ref)))

    print("KERNEL_OK")
</pallas_src>

<mosaic_0001>
module attributes {stable_mosaic.version = 11 : i64} {
  func.func @_mlp_kernel(%arg0: i32, %arg1: memref<64x32xf32, #tpu.memory_space<vmem>>, %arg2: memref<32x128xf32, #tpu.memory_space<vmem>>, %arg3: memref<1x128xf32, #tpu.memory_space<vmem>>, %arg4: memref<128x32xf32, #tpu.memory_space<vmem>>, %arg5: memref<1x32xf32, #tpu.memory_space<vmem>>, %arg6: memref<64x32xf32, #tpu.memory_space<vmem>>) attributes {dimension_semantics = [#tpu.dimension_semantics<parallel>], iteration_bounds = array<i64: 2>, scalar_prefetch = 0 : i64, scratch_operands = 0 : i64, tpu.core_type = #tpu.core_type<tc>, window_params = [{transform_indices = @transform_0, window_bounds = array<i64: 64, 32>}, {pipeline_mode = #tpu.pipeline_mode<synchronous>, transform_indices = @transform_1, window_bounds = array<i64: 32, 128>}, {pipeline_mode = #tpu.pipeline_mode<synchronous>, transform_indices = @transform_2, window_bounds = array<i64: 1, 128>}, {pipeline_mode = #tpu.pipeline_mode<synchronous>, transform_indices = @transform_3, window_bounds = array<i64: 128, 32>}, {pipeline_mode = #tpu.pipeline_mode<synchronous>, transform_indices = @transform_4, window_bounds = array<i64: 1, 32>}, {transform_indices = @transform_5, window_bounds = array<i64: 64, 32>}]} {
    %c0 = arith.constant 0 : index
    %c0_0 = arith.constant 0 : index
    %0 = vector.load %arg1[%c0, %c0_0] : memref<64x32xf32, #tpu.memory_space<vmem>>, vector<64x32xf32>
    %c0_1 = arith.constant 0 : index
    %c0_2 = arith.constant 0 : index
    %1 = vector.load %arg2[%c0_1, %c0_2] : memref<32x128xf32, #tpu.memory_space<vmem>>, vector<32x128xf32>
    %cst = arith.constant dense<0.000000e+00> : vector<64x128xf32>
    %2 = tpu.matmul %0, %1, %cst {dimension_numbers = #tpu.dot_dimension_numbers<[1], [0], [0], [1], [0, 0, 1, 1], [], []>} : vector<64x32xf32>, vector<32x128xf32>, vector<64x128xf32> -> vector<64x128xf32>
    %c0_3 = arith.constant 0 : index
    %c0_4 = arith.constant 0 : index
    %3 = vector.load %arg3[%c0_3, %c0_4] : memref<1x128xf32, #tpu.memory_space<vmem>>, vector<1x128xf32>
    %4 = vector.broadcast %3 : vector<1x128xf32> to vector<64x128xf32>
    %5 = arith.addf %2, %4 : vector<64x128xf32>
    %cst_5 = arith.constant 5.000000e-01 : f32
    %6 = vector.broadcast %cst_5 : f32 to vector<64x128xf32>
    %7 = arith.mulf %6, %5 : vector<64x128xf32>
    %cst_6 = arith.constant 0.707106769 : f32
    %8 = vector.broadcast %cst_6 : f32 to vector<64x128xf32>
    %9 = arith.mulf %5, %8 : vector<64x128xf32>
    %10 = math.absf %9 : vector<64x128xf32>
    %cst_7 = arith.constant 0.327591091 : f32
    %11 = vector.broadcast %cst_7 : f32 to vector<64x128xf32>
    %12 = arith.mulf %11, %10 : vector<64x128xf32>
    %cst_8 = arith.constant 1.000000e+00 : f32
    %13 = vector.broadcast %cst_8 : f32 to vector<64x128xf32>
    %14 = arith.addf %13, %12 : vector<64x128xf32>
    %cst_9 = arith.constant 1.000000e+00 : f32
    %15 = vector.broadcast %cst_9 : f32 to vector<64x128xf32>
    %16 = arith.divf %15, %14 : vector<64x128xf32>
    %cst_10 = arith.constant 1.06140542 : f32
    %17 = vector.broadcast %cst_10 : f32 to vector<64x128xf32>
    %18 = arith.mulf %17, %16 : vector<64x128xf32>
    %cst_11 = arith.constant -1.45315206 : f32
    %19 = vector.broadcast %cst_11 : f32 to vector<64x128xf32>
    %20 = arith.addf %18, %19 : vector<64x128xf32>
    %21 = arith.mulf %20, %16 : vector<64x128xf32>
    %cst_12 = arith.constant 1.42141378 : f32
    %22 = vector.broadcast %cst_12 : f32 to vector<64x128xf32>
    %23 = arith.addf %21, %22 : vector<64x128xf32>
    %24 = arith.mulf %23, %16 : vector<64x128xf32>
    %cst_13 = arith.constant -0.284496725 : f32
    %25 = vector.broadcast %cst_13 : f32 to vector<64x128xf32>
    %26 = arith.addf %24, %25 : vector<64x128xf32>
    %27 = arith.mulf %26, %16 : vector<64x128xf32>
    %cst_14 = arith.constant 0.254829586 : f32
    %28 = vector.broadcast %cst_14 : f32 to vector<64x128xf32>
    %29 = arith.addf %27, %28 : vector<64x128xf32>
    %30 = arith.mulf %29, %16 : vector<64x128xf32>
    %cst_15 = arith.constant 0.000000e+00 : f32
    %31 = vector.broadcast %cst_15 : f32 to vector<64x128xf32>
    %32 = arith.subf %31, %10 : vector<64x128xf32>
    %33 = arith.mulf %32, %10 : vector<64x128xf32>
    %34 = math.exp %33 : vector<64x128xf32>
    %35 = arith.mulf %30, %34 : vector<64x128xf32>
    %cst_16 = arith.constant 1.000000e+00 : f32
    %36 = vector.broadcast %cst_16 : f32 to vector<64x128xf32>
    %37 = arith.subf %36, %35 : vector<64x128xf32>
    %cst_17 = arith.constant 0.000000e+00 : f32
    %38 = vector.broadcast %cst_17 : f32 to vector<64x128xf32>
    %39 = arith.cmpf oge, %9, %38 : vector<64x128xf32>
    %cst_18 = arith.constant 0.000000e+00 : f32
    %40 = vector.broadcast %cst_18 : f32 to vector<64x128xf32>
    %41 = arith.subf %40, %37 : vector<64x128xf32>
    %42 = arith.select %39, %37, %41 : vector<64x128xi1>, vector<64x128xf32>
    %cst_19 = arith.constant 1.000000e+00 : f32
    %43 = vector.broadcast %cst_19 : f32 to vector<64x128xf32>
    %44 = arith.addf %43, %42 : vector<64x128xf32>
    %45 = arith.mulf %7, %44 : vector<64x128xf32>
    %c0_20 = arith.constant 0 : index
    %c0_21 = arith.constant 0 : index
    %46 = vector.load %arg4[%c0_20, %c0_21] : memref<128x32xf32, #tpu.memory_space<vmem>>, vector<128x32xf32>
    %cst_22 = arith.constant dense<0.000000e+00> : vector<64x32xf32>
    %47 = tpu.matmul %45, %46, %cst_22 {dimension_numbers = #tpu.dot_dimension_numbers<[1], [0], [0], [1], [0, 0, 1, 1], [], []>} : vector<64x128xf32>, vector<128x32xf32>, vector<64x32xf32> -> vector<64x32xf32>
    %c0_23 = arith.constant 0 : index
    %c0_24 = arith.constant 0 : index
    %48 = vector.load %arg5[%c0_23, %c0_24] : memref<1x32xf32, #tpu.memory_space<vmem>>, vector<1x32xf32>
    %49 = vector.broadcast %48 : vector<1x32xf32> to vector<64x32xf32>
    %50 = arith.addf %47, %49 : vector<64x32xf32>
    %c0_25 = arith.constant 0 : index
    %c0_26 = arith.constant 0 : index
    %51 = vector.load %arg6[%c0_25, %c0_26] : memref<64x32xf32, #tpu.memory_space<vmem>>, vector<64x32xf32>
    tpu.vector_store %arg6[%c0_25, %c0_26], %50 {strides = array<i32>} : memref<64x32xf32, #tpu.memory_space<vmem>>, vector<64x32xf32>,
    return
  }
  func.func @transform_0(%arg0: i32) -> (i32, i32) {
    %c0_i32 = arith.constant 0 : i32
    %c0_i32_0 = arith.constant 0 : i32
    return %arg0, %c0_i32 : i32, i32
  }
  func.func @transform_1(%arg0: i32) -> (i32, i32) {
    %c0_i32 = arith.constant 0 : i32
    %c0_i32_0 = arith.constant 0 : i32
    %c0_i32_1 = arith.constant 0 : i32
    return %c0_i32, %c0_i32_0 : i32, i32
  }
  func.func @transform_2(%arg0: i32) -> (i32, i32) {
    %c0_i32 = arith.constant 0 : i32
    %c0_i32_0 = arith.constant 0 : i32
    %c0_i32_1 = arith.constant 0 : i32
    return %c0_i32, %c0_i32_0 : i32, i32
  }
  func.func @transform_3(%arg0: i32) -> (i32, i32) {
    %c0_i32 = arith.constant 0 : i32
    %c0_i32_0 = arith.constant 0 : i32
    %c0_i32_1 = arith.constant 0 : i32
    return %c0_i32, %c0_i32_0 : i32, i32
  }
  func.func @transform_4(%arg0: i32) -> (i32, i32) {
    %c0_i32 = arith.constant 0 : i32
    %c0_i32_0 = arith.constant 0 : i32
    %c0_i32_1 = arith.constant 0 : i32
    return %c0_i32, %c0_i32_0 : i32, i32
  }
  func.func @transform_5(%arg0: i32) -> (i32, i32) {
    %c0_i32 = arith.constant 0 : i32
    %c0_i32_0 = arith.constant 0 : i32
    return %arg0, %c0_i32 : i32, i32
  }
}

</mosaic_0001>

<llo_original>
// kernel: tpu_custom_call.1
$region0: #{tpu_custom_call.1}
  #allocation0 [shape = 'u32[]', space=smem, size = 0x4, offset = 0x4, fixed_abs, tag = 'smem constant byte address 0x4 - core index']
  #allocation1 [shape = 'u32[144,128]{1,0:T(1,128)}', space=vmem, size = 0x12000, scoped, tag = 'internal scratch']
  %s0 = inlined_call_operand.vmem [shape: f32[128,32], index: 0, kind: input, shape index: {}]
  %s1 = inlined_call_operand.vmem [shape: f32[32,128], index: 1, kind: input, shape index: {}]
  %s2 = inlined_call_operand.vmem [shape: f32[1,128], index: 2, kind: input, shape index: {}]
  %s3 = inlined_call_operand.vmem [shape: f32[128,32], index: 3, kind: input, shape index: {}]
  %s4 = inlined_call_operand.vmem [shape: f32[1,32], index: 4, kind: input, shape index: {}]
  %s5 = inlined_call_operand.vmem [shape: f32[128,32], index: 5, kind: output, shape index: {}]
  %s6 = sld [smem:[#allocation0]]
  $region53: #{tpu_custom_call.1} parent=0
    _
  %s8 = ssub.s32 1, %s6
  %s9 = scalar_select 0, %s8, %s6
  loop: start=0, step=1, limit=4
  $region2: #{tpu_custom_call.1} parent=0 // loop_pre_header
    _
  $region3: #{tpu_custom_call.1} parent=0 // loop_header
    %s11 = sphi 0, %s15
    %p12 = scmp.ge.s32.totalorder %s11, 4
    %s21 = sphi 0, %s23
    %s24 = sphi 0, %s21
    %s25 = sphi 0, %s24
    %s41 = sphi 0, %s25
    %s45 = sphi 0, %s45
    %s47 = sphi 0, %s45
    %s48 = sphi 0, %s47
    %s62 = sphi 0, %s48
    %s66 = sphi 0, %s66
    %s68 = sphi 0, %s66
    %s69 = sphi 0, %s68
    %s83 = sphi 0, %s69
    %s87 = sphi 0, %s87
    %s89 = sphi 0, %s87
    %s90 = sphi 0, %s89
    %s104 = sphi 0, %s90
    %s108 = sphi 0, %s108
    %s110 = sphi 0, %s108
    %s111 = sphi 0, %s110
    %s125 = sphi 0, %s111
    %s131 = sphi 0, %s133
    %s134 = sphi 0, %s131
    %s135 = sphi 0, %s134
    %s151 = sphi 0, %s135
  $region4: #{tpu_custom_call.1} parent=0 // loop_header_branch
    %14 = sbr.rel (%p12) target = $region8
  $region5: #{tpu_custom_call.1} parent=0 // loop_body
    %s16 = ssub.s32 %s11, 1
    %s17 = ssub.s32 %s11, 2
    %s18 = sadd.s32 %s11, 1
    %s19 = ssub.s32 %s11, %s18
    %p20 = scmp.eq.s32.totalorder %s19, 0
    %s22 = sadd.s32 %s21, 1
    %s23 = scalar_select %p20, %s21, %s22
    %p26 = pneg %p20
    %p27 = scmp.eq.s32.totalorder %s11, 1
    %p28 = por %p26, %p27
    %p29 = scmp.ne.s32.totalorder %s21, %s24
    %p30 = scmp.eq.s32.totalorder %s11, 0
    %p31 = por %p29, %p30
    %p32 = scmp.ne.s32.totalorder %s21, %s24
    %p33 = scmp.eq.s32.totalorder %s16, 1
    %p34 = por %p32, %p33
    %p35 = scmp.ne.s32.totalorder %s24, %s25
    %p36 = scmp.eq.s32.totalorder %s16, 0
    %p37 = por %p35, %p36
    %p38 = scmp.ne.s32.totalorder %s24, %s25
    %p39 = scmp.eq.s32.totalorder %s17, 1
    %p40 = por %p38, %p39
    %p42 = scmp.ne.s32.totalorder %s25, %s41
    %p43 = scmp.eq.s32.totalorder %s17, 0
    %p44 = por %p42, %p43
    %s46 = sadd.s32 %s45, 1
    %p49 = scmp.eq.s32.totalorder %s11, 1
    %p50 = scmp.ne.s32.totalorder %s45, %s47
    %p51 = scmp.eq.s32.totalorder %s11, 0
    %p52 = por %p50, %p51
    %p53 = scmp.ne.s32.totalorder %s45, %s47
    %p54 = scmp.eq.s32.totalorder %s16, 1
    %p55 = por %p53, %p54
    %p56 = scmp.ne.s32.totalorder %s47, %s48
    %p57 = scmp.eq.s32.totalorder %s16, 0
    %p58 = por %p56, %p57
    %p59 = scmp.ne.s32.totalorder %s47, %s48
    %p60 = scmp.eq.s32.totalorder %s17, 1
    %p61 = por %p59, %p60
    %p63 = scmp.ne.s32.totalorder %s48, %s62
    %p64 = scmp.eq.s32.totalorder %s17, 0
    %p65 = por %p63, %p64
    %s67 = sadd.s32 %s66, 1
    %p70 = scmp.eq.s32.totalorder %s11, 1
    %p71 = scmp.ne.s32.totalorder %s66, %s68
    %p72 = scmp.eq.s32.totalorder %s11, 0
    %p73 = por %p71, %p72
    %p74 = scmp.ne.s32.totalorder %s66, %s68
    %p75 = scmp.eq.s32.totalorder %s16, 1
    %p76 = por %p74, %p75
    %p77 = scmp.ne.s32.totalorder %s68, %s69
    %p78 = scmp.eq.s32.totalorder %s16, 0
    %p79 = por %p77, %p78
    %p80 = scmp.ne.s32.totalorder %s68, %s69
    %p81 = scmp.eq.s32.totalorder %s17, 1
    %p82 = por %p80, %p81
    %p84 = scmp.ne.s32.totalorder %s69, %s83
    %p85 = scmp.eq.s32.totalorder %s17, 0
    %p86 = por %p84, %p85
    %s88 = sadd.s32 %s87, 1
    %p91 = scmp.eq.s32.totalorder %s11, 1
    %p92 = scmp.ne.s32.totalorder %s87, %s89
    %p93 = scmp.eq.s32.totalorder %s11, 0
    %p94 = por %p92, %p93
    %p95 = scmp.ne.s32.totalorder %s87, %s89
    %p96 = scmp.eq.s32.totalorder %s16, 1
    %p97 = por %p95, %p96
    %p98 = scmp.ne.s32.totalorder %s89, %s90
    %p99 = scmp.eq.s32.totalorder %s16, 0
    %p100 = por %p98, %p99
    %p101 = scmp.ne.s32.totalorder %s89, %s90
    %p102 = scmp.eq.s32.totalorder %s17, 1
    %p103 = por %p101, %p102
    %p105 = scmp.ne.s32.totalorder %s90, %s104
    %p106 = scmp.eq.s32.totalorder %s17, 0
    %p107 = por %p105, %p106
    %s109 = sadd.s32 %s108, 1
    %p112 = scmp.eq.s32.totalorder %s11, 1
    %p113 = scmp.ne.s32.totalorder %s108, %s110
    %p114 = scmp.eq.s32.totalorder %s11, 0
    %p115 = por %p113, %p114
    %p116 = scmp.ne.s32.totalorder %s108, %s110
    %p117 = scmp.eq.s32.totalorder %s16, 1
    %p118 = por %p116, %p117
    %p119 = scmp.ne.s32.totalorder %s110, %s111
    %p120 = scmp.eq.s32.totalorder %s16, 0
    %p121 = por %p119, %p120
    %p122 = scmp.ne.s32.totalorder %s110, %s111
    %p123 = scmp.eq.s32.totalorder %s17, 1
    %p124 = por %p122, %p123
    %p126 = scmp.ne.s32.totalorder %s111, %s125
    %p127 = scmp.eq.s32.totalorder %s17, 0
    %p128 = por %p126, %p127
    %s129 = ssub.s32 %s11, %s18
    %p130 = scmp.eq.s32.totalorder %s129, 0
    %s132 = sadd.s32 %s131, 1
    %s133 = scalar_select %p130, %s131, %s132
    %p136 = pneg %p130
    %p137 = scmp.eq.s32.totalorder %s11, 1
    %p138 = por %p136, %p137
    %p139 = scmp.ne.s32.totalorder %s131, %s134
    %p140 = scmp.eq.s32.totalorder %s11, 0
    %p141 = por %p139, %p140
    %p142 = scmp.ne.s32.totalorder %s131, %s134
    %p143 = scmp.eq.s32.totalorder %s16, 1
    %p144 = por %p142, %p143
    %p145 = scmp.ne.s32.totalorder %s134, %s135
    %p146 = scmp.eq.s32.totalorder %s16, 0
    %p147 = por %p145, %p146
    %p148 = scmp.ne.s32.totalorder %s134, %s135
    %p149 = scmp.eq.s32.totalorder %s17, 1
    %p150 = por %p148, %p149
    %p152 = scmp.ne.s32.totalorder %s135, %s151
    %p153 = scmp.eq.s32.totalorder %s17, 0
    %p154 = por %p152, %p153
    %p155 = scmp.le.s32.totalorder 1, %s11
    %p156 = scmp.lt.s32.totalorder %s11, 3
    %p157 = pnand %p155, %p156
    %p158 = pneg %p157
    // Predicated region
    $region9: #{tpu_custom_call.1} parent=5 // pred_check
      _
    $region10: #{tpu_custom_call.1} parent=5 // pred_check_branch
      %160 = sbr.rel (%p157) target = $region12
    $region11: #{tpu_custom_call.1} parent=5 // pred_region
      %s161 = ssub.s32 %s11, 1
      // Predicated region
      $region13: #{tpu_custom_call.1} parent=11 // pred_check
        %p162 = pneg %p58
      $region14: #{tpu_custom_call.1} parent=11 // pred_check_branch
        %164 = sbr.rel (%p162) target = $region16
      $region15: #{tpu_custom_call.1} parent=11 // pred_region
        _
      $region16: #{tpu_custom_call.1} parent=11 // pred_fallthru
        _
      // Predicated region
      $region17: #{tpu_custom_call.1} parent=11 // pred_check
        %p165 = pneg %p79
      $region18: #{tpu_custom_call.1} parent=11 // pred_check_branch
        %167 = sbr.rel (%p165) target = $region20
      $region19: #{tpu_custom_call.1} parent=11 // pred_region
        _
      $region20: #{tpu_custom_call.1} parent=11 // pred_fallthru
        _
      // Predicated region
      $region21: #{tpu_custom_call.1} parent=11 // pred_check
        %p168 = pneg %p100
      $region22: #{tpu_custom_call.1} parent=11 // pred_check_branch
        %170 = sbr.rel (%p168) target = $region24
      $region23: #{tpu_custom_call.1} parent=11 // pred_region
        _
      $region24: #{tpu_custom_call.1} parent=11 // pred_fallthru
        _
      // Predicated region
      $region25: #{tpu_custom_call.1} parent=11 // pred_check
        %p171 = pneg %p121
      $region26: #{tpu_custom_call.1} parent=11 // pred_check_branch
        %173 = sbr.rel (%p171) target = $region28
      $region27: #{tpu_custom_call.1} parent=11 // pred_region
        _
      $region28: #{tpu_custom_call.1} parent=11 // pred_fallthru
        _
    $region12: #{tpu_custom_call.1} parent=5 // pred_fallthru
      _
    %p174 = scmp.lt.s32.totalorder %s11, 2
    // Predicated region
    $region29: #{tpu_custom_call.1} parent=5 // pred_check
      %p175 = pneg %p174
    $region30: #{tpu_custom_call.1} parent=5 // pred_check_branch
      %177 = sbr.rel (%p175) target = $region32
    $region31: #{tpu_custom_call.1} parent=5 // pred_region
      // Predicated region
      $region33: #{tpu_custom_call.1} parent=31 // pred_check
        %p178 = pneg %p31
      $region34: #{tpu_custom_call.1} parent=31 // pred_check_branch
        %180 = sbr.rel (%p178) target = $region36
      $region35: #{tpu_custom_call.1} parent=31 // pred_region
        %s181 = smul.u32 8, %s11
        %p182 = scmp.lt.s32.totalorder %s181, 15
        %s183 = scalar_select %p182, %s181, 15
        %s184 = smul.addr %s183, 8
        %s185 = scalar_lea.vmem %s0, %s184
        %s186 = smul.u32 8, %s11
      $region36: #{tpu_custom_call.1} parent=31 // pred_fallthru
        _
    $region32: #{tpu_custom_call.1} parent=5 // pred_fallthru
      _
    %p187 = scmp.le.s32.totalorder 1, %s11
    %p188 = scmp.lt.s32.totalorder %s11, 3
    %p189 = pnand %p187, %p188
    %p190 = pneg %p189
    // Predicated region
    $region37: #{tpu_custom_call.1} parent=5 // pred_check
      _
    $region38: #{tpu_custom_call.1} parent=5 // pred_check_branch
      %192 = sbr.rel (%p189) target = $region40
    $region39: #{tpu_custom_call.1} parent=5 // pred_region
      %s193 = ssub.s32 %s11, 1
      %s194 = smul.u32 8, %s16
      %p195 = scmp.lt.s32.totalorder %s194, 15
      %s196 = scalar_select %p195, %s194, 15
      %s197 = smul.addr %s196, 8
      %s198 = scalar_lea.vmem %s0, %s197
      %p199 = pneg %p37
      %p200 = pneg %p34
      %p201 = pneg %p58
      %p202 = pneg %p55
      %p203 = pneg %p79
      %p204 = pneg %p76
      %p205 = pneg %p100
      %p206 = pneg %p97
      %p207 = pneg %p121
      %p208 = pneg %p118
      %p209 = pneg %p147
      %p210 = pneg %p144
      %s211 = smul.u32 8, %s16
      %p212 = scmp.lt.s32.totalorder %s211, 15
      %s213 = scalar_select %p212, %s211, 15
      %s214 = smul.addr %s213, 8
      %s215 = scalar_lea.vmem %s5, %s214
      %s216 = smul.u32 8, %s16
      %p217 = scmp.lt.s32.totalorder %s216, 15
      %s218 = scalar_select %p217, %s216, 15
      %s219 = smul.addr %s218, 8
      %s220 = scalar_lea.vmem %s0, %s219
      %s221 = smul.u32 8, %s16
      %s222 = smul.u32 8, %s16
      %p223 = scmp.lt.s32.totalorder %s222, 15
      %s224 = scalar_select %p223, %s222, 15
      %s225 = smul.addr %s224, 8
      %s226 = scalar_lea.vmem %s5, %s225
      %s227 = smul.u32 8, %s16
      %v228 = vld [vmem:[%s220] sm:$0xff]
      %v229 = vld [vmem:[%s220 + $0x8] sm:$0xff]
      %v230 = vld [vmem:[%s220 + $0x10] sm:$0xff]
      %v231 = vld [vmem:[%s220 + $0x18] sm:$0xff]
      %v232 = vld [vmem:[%s220 + $0x20] sm:$0xff]
      %v233 = vld [vmem:[%s220 + $0x28] sm:$0xff]
      %v234 = vld [vmem:[%s220 + $0x30] sm:$0xff]
      %v235 = vld [vmem:[%s220 + $0x38] sm:$0xff]
      %v236 = vld [vmem:[%s1] sm:$0xff]
      %v237 = vld [vmem:[%s1 + $0x8] sm:$0xff]
      %v238 = vld [vmem:[%s1 + $0x10] sm:$0xff]
      %v239 = vld [vmem:[%s1 + $0x18] sm:$0xff]
      %v240 = vld [vmem:[%s2] sm:$0x1]
      %v242 = vlaneseq
      %v243 = vshrl.u32 %v242, 7
      %v244 = vsub.s32 0, %v243
      %v245 = vrot.slane %v240, %v244
      %vm247 = vcmask 261120
      %v249 = vsel %vm247, %v228, 0
      %v252 = vsel %vm247, %v229, 0
      %v255 = vsel %vm247, %v230, 0
      %v258 = vsel %vm247, %v231, 0
      %v261 = vsel %vm247, %v232, 0
      %v264 = vsel %vm247, %v233, 0
      %v267 = vsel %vm247, %v234, 0
      %v270 = vsel %vm247, %v235, 0
      %272 = vmatprep.subr.mxu0 0.0
      %273 = vmatpush1.msra.mxu0 %v236
      %274 = vmatprep.subr.mxu0 0.0
      %275 = vmatpush1.msra.mxu0 %v237
      %276 = vmatprep.subr.mxu0 0.0
      %277 = vmatpush1.msra.mxu0 %v238
      %278 = vmatprep.subr.mxu0 0.0
      %279 = vmatpush1.msra.mxu0 %v239
      %280 = vmatprep.subr.mxu0 0.0
      %281 = vmatpush1.msra.mxu0 0.0
      %282 = vmatprep.subr.mxu0 0.0
      %283 = vmatpush1.msra.mxu0 0.0
      %284 = vmatprep.subr.mxu0 0.0
      %285 = vmatpush1.msra.mxu0 0.0
      %286 = vmatprep.subr.mxu0 0.0
      %287 = vmatpush1.msra.mxu0 0.0
      %288 = vmatprep.subr.mxu0 0.0
      %289 = vmatpush1.msra.mxu0 0.0
      %290 = vmatprep.subr.mxu0 0.0
      %291 = vmatpush1.msra.mxu0 0.0
      %292 = vmatprep.subr.mxu0 0.0
      %293 = vmatpush1.msra.mxu0 0.0
      %294 = vmatprep.subr.mxu0 0.0
      %295 = vmatpush1.msra.mxu0 0.0
      %296 = vmatprep.subr.mxu0 0.0
      %297 = vmatpush1.msra.mxu0 0.0
      %298 = vmatprep.subr.mxu0 0.0
      %299 = vmatpush1.msra.mxu0 0.0
      %300 = vmatprep.subr.mxu0 0.0
      %301 = vmatpush1.msra.mxu0 0.0
      %302 = vmatprep.subr.mxu0 0.0
      %303 = vmatpush1.msra.mxu0 0.0
      %304 = vmatprep.subr.mxu0 0.0
      %305 = vmatpush1.msra.mxu0 0.0
      %306 = vmatprep.subr.mxu0 0.0
      %307 = vmatpush1.msra.mxu0 0.0
      %308 = vmatprep.subr.mxu0 0.0
      %309 = vmatpush1.msra.mxu0 0.0
      %310 = vmatprep.subr.mxu0 0.0
      %311 = vmatpush1.msra.mxu0 0.0
      %312 = vmatprep.subr.mxu0 0.0
      %313 = vmatpush1.msra.mxu0 0.0
      %314 = vmatprep.subr.mxu0 0.0
      %315 = vmatpush1.msra.mxu0 0.0
      %316 = vmatprep.subr.mxu0 0.0
      %317 = vmatpush1.msra.mxu0 0.0
      %318 = vmatprep.subr.mxu0 0.0
      %319 = vmatpush1.msra.mxu0 0.0
      %320 = vmatprep.subr.mxu0 0.0
      %321 = vmatpush1.msra.mxu0 0.0
      %322 = vmatprep.subr.mxu0 0.0
      %323 = vmatpush1.msra.mxu0 0.0
      %324 = vmatprep.subr.mxu0 0.0
      %325 = vmatpush1.msra.mxu0 0.0
      %326 = vmatprep.subr.mxu0 0.0
      %327 = vmatpush1.msra.mxu0 0.0
      %328 = vmatprep.subr.mxu0 0.0
      %329 = vmatpush1.msra.mxu0 0.0
      %330 = vmatprep.subr.mxu0 0.0
      %331 = vmatpush1.msra.mxu0 0.0
      %332 = vmatprep.subr.mxu0 0.0
      %333 = vmatpush1.msra.mxu0 0.0
      %334 = vmatprep.subr.mxu0 0.0
      %335 = vmatpush1.msra.mxu0 0.0
      %336 = vmatprep.mubr.f32.mxu0 0.0
      %337 = vmatmul.mubr.f32.gmra.mrb[0].mxu0 %v249
      %v338 = vpop.f32.mrb[0].mxu0
      %v339 = vadd.f32 %v245, %v338
      %v340 = vpop.f32.mrb[0].mxu0
      %341 = vmatprep.mubr.f32.mxu0 0.0
      %342 = vmatmul.mubr.f32.gmra.mrb[0].mxu0 %v252
      %v343 = vpop.f32.mrb[0].mxu0
      %v344 = vadd.f32 %v245, %v343
      %v345 = vpop.f32.mrb[0].mxu0
      %346 = vmatprep.mubr.f32.mxu0 0.0
      %347 = vmatmul.mubr.f32.gmra.mrb[0].mxu0 %v255
      %v348 = vpop.f32.mrb[0].mxu0
      %v349 = vadd.f32 %v245, %v348
      %v350 = vpop.f32.mrb[0].mxu0
      %351 = vmatprep.mubr.f32.mxu0 0.0
      %352 = vmatmul.mubr.f32.gmra.mrb[0].mxu0 %v258
      %v353 = vpop.f32.mrb[0].mxu0
      %v354 = vadd.f32 %v245, %v353
      %v355 = vpop.f32.mrb[0].mxu0
      %356 = vmatprep.mubr.f32.mxu0 0.0
      %357 = vmatmul.mubr.f32.gmra.mrb[0].mxu0 %v261
      %v358 = vpop.f32.mrb[0].mxu0
      %v359 = vadd.f32 %v245, %v358
      %v360 = vpop.f32.mrb[0].mxu0
      %361 = vmatprep.mubr.f32.mxu0 0.0
      %362 = vmatmul.mubr.f32.gmra.mrb[0].mxu0 %v264
      %v363 = vpop.f32.mrb[0].mxu0
      %v364 = vadd.f32 %v245, %v363
      %v365 = vpop.f32.mrb[0].mxu0
      %366 = vmatprep.mubr.f32.mxu0 0.0
      %367 = vmatmul.mubr.f32.gmra.mrb[0].mxu0 %v267
      %v368 = vpop.f32.mrb[0].mxu0
      %v369 = vadd.f32 %v245, %v368
      %v370 = vpop.f32.mrb[0].mxu0
      %371 = vmatprep.mubr.f32.mxu0 0.0
      %372 = vmatmul.mubr.f32.gmra.mrb[0].mxu0 %v270
      %v373 = vpop.f32.mrb[0].mxu0
      %v374 = vadd.f32 %v245, %v373
      %v375 = vpop.f32.mrb[0].mxu0
      %376 = vdwg.mxu0
      %v377 = vmul.f32 %v339, 0.5
      %v378 = vmul.f32 %v344, 0.5
      %v379 = vmul.f32 %v349, 0.5
      %v380 = vmul.f32 %v354, 0.5
      %v381 = vmul.f32 %v359, 0.5
      %v382 = vmul.f32 %v364, 0.5
      %v383 = vmul.f32 %v369, 0.5
      %v384 = vmul.f32 %v374, 0.5
      %v385 = vmul.f32 %v339, 0.70710677
      %v386 = vmul.f32 %v344, 0.70710677
      %v387 = vmul.f32 %v349, 0.70710677
      %v388 = vmul.f32 %v354, 0.70710677
      %v389 = vmul.f32 %v359, 0.70710677
      %v390 = vmul.f32 %v364, 0.70710677
      %v391 = vmul.f32 %v369, 0.70710677
      %v392 = vmul.f32 %v374, 0.70710677
      %v393 = vand.u32 2147483647, %v385
      %v394 = vand.u32 2147483647, %v386
      %v395 = vand.u32 2147483647, %v387
      %v396 = vand.u32 2147483647, %v388
      %v397 = vand.u32 2147483647, %v389
      %v398 = vand.u32 2147483647, %v390
      %v399 = vand.u32 2147483647, %v391
      %v400 = vand.u32 2147483647, %v392
      %v401 = vmul.f32 %v393, 0.3275911
      %v402 = vmul.f32 %v394, 0.3275911
      %v403 = vmul.f32 %v395, 0.3275911
      %v404 = vmul.f32 %v396, 0.3275911
      %v405 = vmul.f32 %v397, 0.3275911
      %v406 = vmul.f32 %v398, 0.3275911
      %v407 = vmul.f32 %v399, 0.3275911
      %v408 = vmul.f32 %v400, 0.3275911
      %v409 = vadd.f32 %v401, 1.0
      %v410 = vadd.f32 %v402, 1.0
      %v411 = vadd.f32 %v403, 1.0
      %v412 = vadd.f32 %v404, 1.0
      %v413 = vadd.f32 %v405, 1.0
      %v414 = vadd.f32 %v406, 1.0
      %v415 = vadd.f32 %v407, 1.0
      %v416 = vadd.f32 %v408, 1.0
      %v417 = vrcp.pop %v409
      %v418 = vmul.f32 1.0, %v417
      %v419 = vrcp.pop %v410
      %v420 = vmul.f32 1.0, %v419
      %v421 = vrcp.pop %v411
      %v422 = vmul.f32 1.0, %v421
      %v423 = vrcp.pop %v412
      %v424 = vmul.f32 1.0, %v423
      %v425 = vrcp.pop %v413
      %v426 = vmul.f32 1.0, %v425
      %v427 = vrcp.pop %v414
      %v428 = vmul.f32 1.0, %v427
      %v429 = vrcp.pop %v415
      %v430 = vmul.f32 1.0, %v429
      %v431 = vrcp.pop %v416
      %v432 = vmul.f32 1.0, %v431
      %v433 = vmul.f32 %v418, 1.0614054
      %v434 = vmul.f32 %v420, 1.0614054
      %v435 = vmul.f32 %v422, 1.0614054
      %v436 = vmul.f32 %v424, 1.0614054
      %v437 = vmul.f32 %v426, 1.0614054
      %v438 = vmul.f32 %v428, 1.0614054
      %v439 = vmul.f32 %v430, 1.0614054
      %v440 = vmul.f32 %v432, 1.0614054
      %v441 = vadd.f32 %v433, -1.4531521
      %v442 = vadd.f32 %v434, -1.4531521
      %v443 = vadd.f32 %v435, -1.4531521
      %v444 = vadd.f32 %v436, -1.4531521
      %v445 = vadd.f32 %v437, -1.4531521
      %v446 = vadd.f32 %v438, -1.4531521
      %v447 = vadd.f32 %v439, -1.4531521
      %v448 = vadd.f32 %v440, -1.4531521
      %v449 = vmul.f32 %v441, %v418
      %v450 = vmul.f32 %v442, %v420
      %v451 = vmul.f32 %v443, %v422
      %v452 = vmul.f32 %v444, %v424
      %v453 = vmul.f32 %v445, %v426
      %v454 = vmul.f32 %v446, %v428
      %v455 = vmul.f32 %v447, %v430
      %v456 = vmul.f32 %v448, %v432
      %v457 = vadd.f32 %v449, 1.4214138
      %v458 = vadd.f32 %v450, 1.4214138
      %v459 = vadd.f32 %v451, 1.4214138
      %v460 = vadd.f32 %v452, 1.4214138
      %v461 = vadd.f32 %v453, 1.4214138
      %v462 = vadd.f32 %v454, 1.4214138
      %v463 = vadd.f32 %v455, 1.4214138
      %v464 = vadd.f32 %v456, 1.4214138
      %v465 = vmul.f32 %v457, %v418
      %v466 = vmul.f32 %v458, %v420
      %v467 = vmul.f32 %v459, %v422
      %v468 = vmul.f32 %v460, %v424
      %v469 = vmul.f32 %v461, %v426
      %v470 = vmul.f32 %v462, %v428
      %v471 = vmul.f32 %v463, %v430
      %v472 = vmul.f32 %v464, %v432
      %v473 = vadd.f32 %v465, -0.28449672
      %v474 = vadd.f32 %v466, -0.28449672
      %v475 = vadd.f32 %v467, -0.28449672
      %v476 = vadd.f32 %v468, -0.28449672
      %v477 = vadd.f32 %v469, -0.28449672
      %v478 = vadd.f32 %v470, -0.28449672
      %v479 = vadd.f32 %v471, -0.28449672
      %v480 = vadd.f32 %v472, -0.28449672
      %v481 = vmul.f32 %v473, %v418
      %v482 = vmul.f32 %v474, %v420
      %v483 = vmul.f32 %v475, %v422
      %v484 = vmul.f32 %v476, %v424
      %v485 = vmul.f32 %v477, %v426
      %v486 = vmul.f32 %v478, %v428
      %v487 = vmul.f32 %v479, %v430
      %v488 = vmul.f32 %v480, %v432
      %v489 = vadd.f32 %v481, 0.2548296
      %v490 = vadd.f32 %v482, 0.2548296
      %v491 = vadd.f32 %v483, 0.2548296
      %v492 = vadd.f32 %v484, 0.2548296
      %v493 = vadd.f32 %v485, 0.2548296
      %v494 = vadd.f32 %v486, 0.2548296
      %v495 = vadd.f32 %v487, 0.2548296
      %v496 = vadd.f32 %v488, 0.2548296
      %v497 = vmul.f32 %v489, %v418
      %v498 = vmul.f32 %v490, %v420
      %v499 = vmul.f32 %v491, %v422
      %v500 = vmul.f32 %v492, %v424
      %v501 = vmul.f32 %v493, %v426
      %v502 = vmul.f32 %v494, %v428
      %v503 = vmul.f32 %v495, %v430
      %v504 = vmul.f32 %v496, %v432
      %v505 = vsub.f32 0.0, %v393
      %v506 = vsub.f32 0.0, %v394
      %v507 = vsub.f32 0.0, %v395
      %v508 = vsub.f32 0.0, %v396
      %v509 = vsub.f32 0.0, %v397
      %v510 = vsub.f32 0.0, %v398
      %v511 = vsub.f32 0.0, %v399
      %v512 = vsub.f32 0.0, %v400
      %v513 = vmul.f32 %v505, %v393
      %v514 = vmul.f32 %v506, %v394
      %v515 = vmul.f32 %v507, %v395
      %v516 = vmul.f32 %v508, %v396
      %v517 = vmul.f32 %v509, %v397
      %v518 = vmul.f32 %v510, %v398
      %v519 = vmul.f32 %v511, %v399
      %v520 = vmul.f32 %v512, %v400
      %v521 = vmul.f32 %v513, 1.442695
      %v522 = vpow.pop %v521
      %v523 = vmul.f32 %v514, 1.442695
      %v524 = vpow.pop %v523
      %v525 = vmul.f32 %v515, 1.442695
      %v526 = vpow.pop %v525
      %v527 = vmul.f32 %v516, 1.442695
      %v528 = vpow.pop %v527
      %v529 = vmul.f32 %v517, 1.442695
      %v530 = vpow.pop %v529
      %v531 = vmul.f32 %v518, 1.442695
      %v532 = vpow.pop %v531
      %v533 = vmul.f32 %v519, 1.442695
      %v534 = vpow.pop %v533
      %v535 = vmul.f32 %v520, 1.442695
      %v536 = vpow.pop %v535
      %v537 = vmul.f32 %v497, %v522
      %v538 = vmul.f32 %v498, %v524
      %v539 = vmul.f32 %v499, %v526
      %v540 = vmul.f32 %v500, %v528
      %v541 = vmul.f32 %v501, %v530
      %v542 = vmul.f32 %v502, %v532
      %v543 = vmul.f32 %v503, %v534
      %v544 = vmul.f32 %v504, %v536
      %v545 = vsub.f32 1.0, %v537
      %v546 = vsub.f32 1.0, %v538
      %v547 = vsub.f32 1.0, %v539
      %v548 = vsub.f32 1.0, %v540
      %v549 = vsub.f32 1.0, %v541
      %v550 = vsub.f32 1.0, %v542
      %v551 = vsub.f32 1.0, %v543
      %v552 = vsub.f32 1.0, %v544
      %vm553 = vcmp.ge.f32.partialorder %v385, 0.0
      %vm554 = vcmp.ge.f32.partialorder %v386, 0.0
      %vm555 = vcmp.ge.f32.partialorder %v387, 0.0
      %vm556 = vcmp.ge.f32.partialorder %v388, 0.0
      %vm557 = vcmp.ge.f32.partialorder %v389, 0.0
      %vm558 = vcmp.ge.f32.partialorder %v390, 0.0
      %vm559 = vcmp.ge.f32.partialorder %v391, 0.0
      %vm560 = vcmp.ge.f32.partialorder %v392, 0.0
      %v561 = vsub.f32 0.0, %v545
      %v562 = vsub.f32 0.0, %v546
      %v563 = vsub.f32 0.0, %v547
      %v564 = vsub.f32 0.0, %v548
      %v565 = vsub.f32 0.0, %v549
      %v566 = vsub.f32 0.0, %v550
      %v567 = vsub.f32 0.0, %v551
      %v568 = vsub.f32 0.0, %v552
      %v569 = vsel %vm553, %v545, %v561
      %v570 = vsel %vm554, %v546, %v562
      %v571 = vsel %vm555, %v547, %v563
      %v572 = vsel %vm556, %v548, %v564
      %v573 = vsel %vm557, %v549, %v565
      %v574 = vsel %vm558, %v550, %v566
      %v575 = vsel %vm559, %v551, %v567
      %v576 = vsel %vm560, %v552, %v568
      %v577 = vadd.f32 %v569, 1.0
      %v578 = vadd.f32 %v570, 1.0
      %v579 = vadd.f32 %v571, 1.0
      %v580 = vadd.f32 %v572, 1.0
      %v581 = vadd.f32 %v573, 1.0
      %v582 = vadd.f32 %v574, 1.0
      %v583 = vadd.f32 %v575, 1.0
      %v584 = vadd.f32 %v576, 1.0
      %v585 = vmul.f32 %v377, %v577
      %v586 = vmul.f32 %v378, %v578
      %v587 = vmul.f32 %v379, %v579
      %v588 = vmul.f32 %v380, %v580
      %v589 = vmul.f32 %v381, %v581
      %v590 = vmul.f32 %v382, %v582
      %v591 = vmul.f32 %v383, %v583
      %v592 = vmul.f32 %v384, %v584
      %v593 = vld [vmem:[%s3] sm:$0xff]
      %v594 = vld [vmem:[%s3 + $0x8] sm:$0xff]
      %v595 = vld [vmem:[%s3 + $0x10] sm:$0xff]
      %v596 = vld [vmem:[%s3 + $0x18] sm:$0xff]
      %v597 = vld [vmem:[%s3 + $0x20] sm:$0xff]
      %v598 = vld [vmem:[%s3 + $0x28] sm:$0xff]
      %v599 = vld [vmem:[%s3 + $0x30] sm:$0xff]
      %v600 = vld [vmem:[%s3 + $0x38] sm:$0xff]
      %v601 = vld [vmem:[%s3 + $0x40] sm:$0xff]
      %v602 = vld [vmem:[%s3 + $0x48] sm:$0xff]
      %v603 = vld [vmem:[%s3 + $0x50] sm:$0xff]
      %v604 = vld [vmem:[%s3 + $0x58] sm:$0xff]
      %v605 = vld [vmem:[%s3 + $0x60] sm:$0xff]
      %v606 = vld [vmem:[%s3 + $0x68] sm:$0xff]
      %v607 = vld [vmem:[%s3 + $0x70] sm:$0xff]
      %v608 = vld [vmem:[%s3 + $0x78] sm:$0xff]
      %v609 = vld [vmem:[%s4] sm:$0x1]
      %v611 = vlaneseq
      %v612 = vshrl.u32 %v611, 7
      %v613 = vsub.s32 0, %v612
      %v614 = vrot.slane %v609, %v613
      %616 = vmatprep.subr.mxu0 0.0
      %617 = vmatpush1.msra.mxu0 %v593
      %618 = vmatprep.subr.mxu0 0.0
      %619 = vmatpush1.msra.mxu0 %v594
      %620 = vmatprep.subr.mxu0 0.0
      %621 = vmatpush1.msra.mxu0 %v595
      %622 = vmatprep.subr.mxu0 0.0
      %623 = vmatpush1.msra.mxu0 %v596
      %624 = vmatprep.subr.mxu0 0.0
      %625 = vmatpush1.msra.mxu0 %v597
      %626 = vmatprep.subr.mxu0 0.0
      %627 = vmatpush1.msra.mxu0 %v598
      %628 = vmatprep.subr.mxu0 0.0
      %629 = vmatpush1.msra.mxu0 %v599
      %630 = vmatprep.subr.mxu0 0.0
      %631 = vmatpush1.msra.mxu0 %v600
      %632 = vmatprep.subr.mxu0 0.0
      %633 = vmatpush1.msra.mxu0 %v601
      %634 = vmatprep.subr.mxu0 0.0
      %635 = vmatpush1.msra.mxu0 %v602
      %636 = vmatprep.subr.mxu0 0.0
      %637 = vmatpush1.msra.mxu0 %v603
      %638 = vmatprep.subr.mxu0 0.0
      %639 = vmatpush1.msra.mxu0 %v604
      %640 = vmatprep.subr.mxu0 0.0
      %641 = vmatpush1.msra.mxu0 %v605
      %642 = vmatprep.subr.mxu0 0.0
      %643 = vmatpush1.msra.mxu0 %v606
      %644 = vmatprep.subr.mxu0 0.0
      %645 = vmatpush1.msra.mxu0 %v607
      %646 = vmatprep.subr.mxu0 0.0
      %647 = vmatpush1.msra.mxu0 %v608
      %648 = vmatprep.subr.mxu0 0.0
      %649 = vmatpush1.msra.mxu0 0.0
      %650 = vmatprep.subr.mxu0 0.0
      %651 = vmatpush1.msra.mxu0 0.0
      %652 = vmatprep.subr.mxu0 0.0
      %653 = vmatpush1.msra.mxu0 0.0
      %654 = vmatprep.subr.mxu0 0.0
      %655 = vmatpush1.msra.mxu0 0.0
      %656 = vmatprep.subr.mxu0 0.0
      %657 = vmatpush1.msra.mxu0 0.0
      %658 = vmatprep.subr.mxu0 0.0
      %659 = vmatpush1.msra.mxu0 0.0
      %660 = vmatprep.subr.mxu0 0.0
      %661 = vmatpush1.msra.mxu0 0.0
      %662 = vmatprep.subr.mxu0 0.0
      %663 = vmatpush1.msra.mxu0 0.0
      %664 = vmatprep.subr.mxu0 0.0
      %665 = vmatpush1.msra.mxu0 0.0
      %666 = vmatprep.subr.mxu0 0.0
      %667 = vmatpush1.msra.mxu0 0.0
      %668 = vmatprep.subr.mxu0 0.0
      %669 = vmatpush1.msra.mxu0 0.0
      %670 = vmatprep.subr.mxu0 0.0
      %671 = vmatpush1.msra.mxu0 0.0
      %672 = vmatprep.subr.mxu0 0.0
      %673 = vmatpush1.msra.mxu0 0.0
      %674 = vmatprep.subr.mxu0 0.0
      %675 = vmatpush1.msra.mxu0 0.0
      %676 = vmatprep.subr.mxu0 0.0
      %677 = vmatpush1.msra.mxu0 0.0
      %678 = vmatprep.subr.mxu0 0.0
      %679 = vmatpush1.msra.mxu0 0.0
      %680 = vmatprep.mubr.f32.mxu0 0.0
      %681 = vmatmul.mubr.f32.gmra.mrb[0].mxu0 %v585
      %v682 = vpop.f32.mrb[0].mxu0
      %v683 = vadd.f32 %v614, %v682
      %v684 = vpop.f32.mrb[0].mxu0
      %685 = vmatprep.mubr.f32.mxu0 0.0
      %686 = vmatmul.mubr.f32.gmra.mrb[0].mxu0 %v586
      %v687 = vpop.f32.mrb[0].mxu0
      %v688 = vadd.f32 %v614, %v687
      %v689 = vpop.f32.mrb[0].mxu0
      %690 = vmatprep.mubr.f32.mxu0 0.0
      %691 = vmatmul.mubr.f32.gmra.mrb[0].mxu0 %v587
      %v692 = vpop.f32.mrb[0].mxu0
      %v693 = vadd.f32 %v614, %v692
      %v694 = vpop.f32.mrb[0].mxu0
      %695 = vmatprep.mubr.f32.mxu0 0.0
      %696 = vmatmul.mubr.f32.gmra.mrb[0].mxu0 %v588
      %v697 = vpop.f32.mrb[0].mxu0
      %v698 = vadd.f32 %v614, %v697
      %v699 = vpop.f32.mrb[0].mxu0
      %700 = vmatprep.mubr.f32.mxu0 0.0
      %701 = vmatmul.mubr.f32.gmra.mrb[0].mxu0 %v589
      %v702 = vpop.f32.mrb[0].mxu0
      %v703 = vadd.f32 %v614, %v702
      %v704 = vpop.f32.mrb[0].mxu0
      %705 = vmatprep.mubr.f32.mxu0 0.0
      %706 = vmatmul.mubr.f32.gmra.mrb[0].mxu0 %v590
      %v707 = vpop.f32.mrb[0].mxu0
      %v708 = vadd.f32 %v614, %v707
      %v709 = vpop.f32.mrb[0].mxu0
      %710 = vmatprep.mubr.f32.mxu0 0.0
      %711 = vmatmul.mubr.f32.gmra.mrb[0].mxu0 %v591
      %v712 = vpop.f32.mrb[0].mxu0
      %v713 = vadd.f32 %v614, %v712
      %v714 = vpop.f32.mrb[0].mxu0
      %715 = vmatprep.mubr.f32.mxu0 0.0
      %716 = vmatmul.mubr.f32.gmra.mrb[0].mxu0 %v592
      %v717 = vpop.f32.mrb[0].mxu0
      %v718 = vadd.f32 %v614, %v717
      %v719 = vpop.f32.mrb[0].mxu0
      %720 = vdwg.mxu0
      %721 = vst.msk [vmem:[%s226] sm:$0xff] %vm247, %v683
      %722 = vst.msk [vmem:[%s226 + $0x8] sm:$0xff] %vm247, %v688
      %723 = vst.msk [vmem:[%s226 + $0x10] sm:$0xff] %vm247, %v693
      %724 = vst.msk [vmem:[%s226 + $0x18] sm:$0xff] %vm247, %v698
      %725 = vst.msk [vmem:[%s226 + $0x20] sm:$0xff] %vm247, %v703
      %726 = vst.msk [vmem:[%s226 + $0x28] sm:$0xff] %vm247, %v708
      %727 = vst.msk [vmem:[%s226 + $0x30] sm:$0xff] %vm247, %v713
      %728 = vst.msk [vmem:[%s226 + $0x38] sm:$0xff] %vm247, %v718
      %s729 = smul.u32 8, %s16
      %p730 = scmp.lt.s32.totalorder %s729, 15
      %s731 = scalar_select %p730, %s729, 15
      %s732 = smul.addr %s731, 8
      %s733 = scalar_lea.vmem %s5, %s732
      // Predicated region
      $region41: #{tpu_custom_call.1} parent=39 // pred_check
        %p734 = pneg %p144
      $region42: #{tpu_custom_call.1} parent=39 // pred_check_branch
        %736 = sbr.rel (%p734) target = $region44
      $region43: #{tpu_custom_call.1} parent=39 // pred_region
        %s737 = smul.u32 8, %s16
      $region44: #{tpu_custom_call.1} parent=39 // pred_fallthru
        _
    $region40: #{tpu_custom_call.1} parent=5 // pred_fallthru
      _
    %p738 = scmp.le.s32.totalorder 2, %s11
    // Predicated region
    $region45: #{tpu_custom_call.1} parent=5 // pred_check
      %p739 = pneg %p738
    $region46: #{tpu_custom_call.1} parent=5 // pred_check_branch
      %741 = sbr.rel (%p739) target = $region48
    $region47: #{tpu_custom_call.1} parent=5 // pred_region
      %s742 = ssub.s32 %s11, 2
      // Predicated region
      $region49: #{tpu_custom_call.1} parent=47 // pred_check
        %p743 = pneg %p150
      $region50: #{tpu_custom_call.1} parent=47 // pred_check_branch
        %745 = sbr.rel (%p743) target = $region52
      $region51: #{tpu_custom_call.1} parent=47 // pred_region
        %s746 = smul.u32 8, %s17
        %p747 = scmp.lt.s32.totalorder %s746, 15
        %s748 = scalar_select %p747, %s746, 15
        %s749 = smul.addr %s748, 8
        %s750 = scalar_lea.vmem %s5, %s749
      $region52: #{tpu_custom_call.1} parent=47 // pred_fallthru
        _
    $region48: #{tpu_custom_call.1} parent=5 // pred_fallthru
      _
  $region6: #{tpu_custom_call.1} parent=0 // loop_footer
    %s15 = sadd.s32 1, %s11
  $region7: #{tpu_custom_call.1} parent=0 // loop_footer_branch
    %10 = sbr.rel target = $region3
  $region8: #{tpu_custom_call.1} parent=0 // loop_exit
    _

</llo_original>
